<compile_context>
chip_gen: v5e
topology: v5e:2x2
jax: 0.10.0
libtpu: 0.0.40
codegen_flags: <defaults>
</compile_context>

<pallas_src>
import functools

import jax
import jax.numpy as jnp
from jax import lax
from jax.experimental import pallas as pl
from jax.experimental.pallas import tpu as pltpu

_MIB = 1024 * 1024


def _round_up(n, m):
    return ((n + m - 1) // m) * m


def _sublane_rows(dtype):
    """Second-minor tile granularity (sublane packing) for a dtype."""
    itemsize = jnp.dtype(dtype).itemsize
    if itemsize >= 4:
        return 8
    if itemsize == 2:
        return 16
    return 32


def _vmem_capacity_bytes():
    """Physical VMEM per TensorCore; conservative fallback if the query fails."""
    try:
        cap = int(getattr(pltpu.get_tpu_info(), "vmem_capacity_bytes"))
        if cap > 0:
            return cap
    except Exception:
        pass
    return 64 * _MIB  # v7x-sized fallback: safe on every generation


def _pick_time_tile(B, C, T, F, dtype, vmem_budget_bytes, target_block_bytes):
    """Pick TT (time rows per block).

    Legal: TT is a multiple of the dtype sublane tile, or TT == T.
    Preference: fits the explicit VMEM working-set budget, gives an even
    (ideally >= 8) total grid-step count for megacore balance, and is the
    largest tile whose native-dtype block stays under target_block_bytes.
    """
    sub = _sublane_rows(dtype)
    itemsize = jnp.dtype(dtype).itemsize
    padded_f = _round_up(F, 128)

    def native_block_bytes(tt):
        return C * _round_up(tt, sub) * padded_f * itemsize

    def working_set_bytes(tt):
        native = native_block_bytes(tt)
        f32 = C * _round_up(tt, sub) * padded_f * 4
        # 2x double-buffered (in + out) at native dtype + ~2x fp32 block of
        # in-kernel temporaries (stats-pass widen, output-pass widen).
        return 4 * native + 2 * f32

    if T <= sub:
        candidates = [T]  # block dim == full array dim is always legal
    else:
        divisors = [tt for tt in range(sub, T + 1, sub) if T % tt == 0]
        # Fallback: non-dividing TT with a masked partial last block. Safe
        # because statistics are per-(b, t) row, so padded rows never mix in.
        candidates = divisors or list(range(sub, T + 1, sub))

    fitting = [tt for tt in candidates if working_set_bytes(tt) <= vmem_budget_bytes]
    if not fitting:
        fitting = [min(candidates)]  # best effort

    def steps(tt):
        return B * pl.cdiv(T, tt)

    preferred = [tt for tt in fitting if steps(tt) >= 8 and steps(tt) % 2 == 0]
    if not preferred:
        preferred = [tt for tt in fitting if steps(tt) >= 2 and steps(tt) % 2 == 0]
    if not preferred:
        preferred = fitting

    best = None
    for tt in sorted(preferred):
        if native_block_bytes(tt) <= target_block_bytes:
            best = tt
    return best if best is not None else min(preferred)


def _ln4dcf_kernel(x_ref, gamma_ref, beta_ref, o_ref, *, eps):
    # x_ref:     (1, C, TT, F)  -- full C / F extents, TT time rows
    # gamma_ref: (1, C, 1, F) fp32 (cast once in the wrapper)
    # beta_ref:  (1, C, 1, F) fp32
    #
    # Stats pass: one streaming read, one-pass moments accumulated in fp32.
    # fp32 accumulation keeps E[x^2] - mu^2 cancellation benign for typical
    # normalized activations (validated against the reference below).
    x = x_ref[...].astype(jnp.float32)
    mu = jnp.mean(x, axis=(1, 3), keepdims=True)            # (1, 1, TT, 1)
    ex2 = jnp.mean(x * x, axis=(1, 3), keepdims=True)
    var = jnp.maximum(ex2 - mu * mu, 0.0)                   # clamp cancellation
    inv_std = lax.rsqrt(var + eps)                          # EUP rsqrt

    # Output pass: re-read x_ref so the fp32-widened stats-pass value does not
    # have to stay live across the whole block (saves ~1 fp32 block of VMEM on
    # v7x); extra VMEM loads are free at this arithmetic intensity.
    xo = x_ref[...].astype(jnp.float32)
    o_ref[...] = ((xo - mu) * inv_std * gamma_ref[...] + beta_ref[...]).astype(o_ref.dtype)


def layer_norm_4d_cf(x, gamma, beta, eps=1e-5, time_tile=None):
    """x: [B, C, T, F] (PyTorch NCHW); gamma/beta: [1, C, 1, F]."""
    B, C, T, F = x.shape
    gamma = jnp.asarray(gamma, jnp.float32).reshape(1, C, 1, F)
    beta = jnp.asarray(beta, jnp.float32).reshape(1, C, 1, F)

    # TODO(synk): if production F (e.g. 65/129/257 frequency bins) is not a
    # multiple of 128, pad F to a lane multiple upstream (or fold a relayout
    # into the producing op) so stores stay unmasked and lane-dense.

    capacity = _vmem_capacity_bytes()
    # Scoped VMEM for this kernel: well above the 16/32 MiB defaults, with
    # headroom below physical capacity (≈96 MiB on 128-MiB v5e/v6e, ≈48 MiB on
    # 64-MiB v7x).
    vmem_limit = int(max(32 * _MIB, min(96 * _MIB, capacity - 16 * _MIB)))
    # Per-block byte target: bigger tiles on the 128-MiB-VMEM generations.
    target_block = 8 * _MIB if capacity >= 100 * _MIB else 4 * _MIB

    if time_tile is not None:
        TT = int(time_tile)
    else:
        TT = _pick_time_tile(
            B, C, T, F, x.dtype,
            vmem_budget_bytes=vmem_limit - 4 * _MIB,
            target_block_bytes=target_block,
        )
    grid = (B, pl.cdiv(T, TT))

    kernel = functools.partial(_ln4dcf_kernel, eps=eps)

    return pl.pallas_call(
        kernel,
        out_shape=jax.ShapeDtypeStruct((B, C, T, F), x.dtype),
        grid_spec=pltpu.PrefetchScalarGridSpec(
            num_scalar_prefetch=0,
            grid=grid,
            in_specs=[
                pl.BlockSpec((1, C, TT, F), lambda b, t: (b, 0, t, 0)),
                pl.BlockSpec((1, C, 1, F), lambda b, t: (0, 0, 0, 0)),
                pl.BlockSpec((1, C, 1, F), lambda b, t: (0, 0, 0, 0)),
            ],
            out_specs=pl.BlockSpec((1, C, TT, F), lambda b, t: (b, 0, t, 0)),
        ),
        compiler_params=pltpu.CompilerParams(
            dimension_semantics=("parallel", "parallel"),
            vmem_limit_bytes=vmem_limit,
        ),
    )(x, gamma, beta)


def _reference(x, gamma, beta, eps=1e-5):
    mu = x.mean(axis=(1, 3), keepdims=True)
    var = x.var(axis=(1, 3), keepdims=True)      # ddof=0 == unbiased=False
    return (x - mu) / jnp.sqrt(var + eps) * gamma + beta


if __name__ == "__main__":
    # Small shapes consistent with the module: B=2, C=4, T=16, F=16.
    B, C, T, F = 2, 4, 16, 16
    key = jax.random.PRNGKey(0)
    kx, kg, kb = jax.random.split(key, 3)
    x = jax.random.normal(kx, (B, C, T, F), dtype=jnp.float32)

    # Non-trivial (deterministic) affine params to exercise the broadcast;
    # module init would be gamma=ones, beta=zeros.
    gamma = 1.0 + 0.1 * jax.random.normal(kg, (1, C, 1, F), dtype=jnp.float32)
    beta = 0.1 * jax.random.normal(kb, (1, C, 1, F), dtype=jnp.float32)

    y = layer_norm_4d_cf(x, gamma, beta)
    y = jax.block_until_ready(y)

    y_ref = _reference(x, gamma, beta)
    assert y.shape == x.shape and y.dtype == x.dtype
    assert jnp.allclose(y, y_ref, atol=1e-5, rtol=1e-5), "mismatch vs reference"

    print("KERNEL_OK")
</pallas_src>

<mosaic_0001>
module attributes {stable_mosaic.version = 11 : i64} {
  func.func @_ln4dcf_kernel(%arg0: i32, %arg1: i32, %arg2: memref<1x4x16x16xf32, #tpu.memory_space<vmem>>, %arg3: memref<1x4x1x16xf32, #tpu.memory_space<vmem>>, %arg4: memref<1x4x1x16xf32, #tpu.memory_space<vmem>>, %arg5: memref<1x4x16x16xf32, #tpu.memory_space<vmem>>) attributes {dimension_semantics = [#tpu.dimension_semantics<parallel>, #tpu.dimension_semantics<parallel>], iteration_bounds = array<i64: 2, 1>, scalar_prefetch = 0 : i64, scratch_operands = 0 : i64, tpu.core_type = #tpu.core_type<tc>, window_params = [{transform_indices = @transform_0, window_bounds = array<i64: 1, 4, 16, 16>}, {pipeline_mode = #tpu.pipeline_mode<synchronous>, transform_indices = @transform_1, window_bounds = array<i64: 1, 4, 1, 16>}, {pipeline_mode = #tpu.pipeline_mode<synchronous>, transform_indices = @transform_2, window_bounds = array<i64: 1, 4, 1, 16>}, {transform_indices = @transform_3, window_bounds = array<i64: 1, 4, 16, 16>}]} {
    %c0 = arith.constant 0 : index
    %c0_0 = arith.constant 0 : index
    %c0_1 = arith.constant 0 : index
    %c0_2 = arith.constant 0 : index
    %0 = vector.load %arg2[%c0, %c0_0, %c0_1, %c0_2] : memref<1x4x16x16xf32, #tpu.memory_space<vmem>>, vector<1x4x16x16xf32>
    %cst = arith.constant dense<0.000000e+00> : vector<1x16xf32>
    %1 = vector.multi_reduction <add>, %0, %cst [1, 3] : vector<1x4x16x16xf32> to vector<1x16xf32>
    %2 = vector.shape_cast %1 : vector<1x16xf32> to vector<1x1x16x1xf32>
    %cst_3 = arith.constant 6.400000e+01 : f32
    %3 = vector.broadcast %cst_3 : f32 to vector<1x1x16x1xf32>
    %4 = arith.divf %2, %3 : vector<1x1x16x1xf32>
    %5 = arith.mulf %0, %0 : vector<1x4x16x16xf32>
    %cst_4 = arith.constant dense<0.000000e+00> : vector<1x16xf32>
    %6 = vector.multi_reduction <add>, %5, %cst_4 [1, 3] : vector<1x4x16x16xf32> to vector<1x16xf32>
    %7 = vector.shape_cast %6 : vector<1x16xf32> to vector<1x1x16x1xf32>
    %cst_5 = arith.constant 6.400000e+01 : f32
    %8 = vector.broadcast %cst_5 : f32 to vector<1x1x16x1xf32>
    %9 = arith.divf %7, %8 : vector<1x1x16x1xf32>
    %10 = arith.mulf %4, %4 : vector<1x1x16x1xf32>
    %11 = arith.subf %9, %10 : vector<1x1x16x1xf32>
    %cst_6 = arith.constant 0.000000e+00 : f32
    %12 = vector.broadcast %cst_6 : f32 to vector<1x1x16x1xf32>
    %13 = arith.maximumf %11, %12 : vector<1x1x16x1xf32>
    %cst_7 = arith.constant 9.99999974E-6 : f32
    %14 = vector.broadcast %cst_7 : f32 to vector<1x1x16x1xf32>
    %15 = arith.addf %13, %14 : vector<1x1x16x1xf32>
    %16 = math.rsqrt %15 : vector<1x1x16x1xf32>
    %c0_8 = arith.constant 0 : index
    %c0_9 = arith.constant 0 : index
    %c0_10 = arith.constant 0 : index
    %c0_11 = arith.constant 0 : index
    %17 = vector.load %arg2[%c0_8, %c0_9, %c0_10, %c0_11] : memref<1x4x16x16xf32, #tpu.memory_space<vmem>>, vector<1x4x16x16xf32>
    %18 = vector.broadcast %4 : vector<1x1x16x1xf32> to vector<1x4x16x16xf32>
    %19 = arith.subf %17, %18 : vector<1x4x16x16xf32>
    %20 = vector.broadcast %16 : vector<1x1x16x1xf32> to vector<1x4x16x16xf32>
    %21 = arith.mulf %19, %20 : vector<1x4x16x16xf32>
    %c0_12 = arith.constant 0 : index
    %c0_13 = arith.constant 0 : index
    %c0_14 = arith.constant 0 : index
    %c0_15 = arith.constant 0 : index
    %22 = vector.load %arg3[%c0_12, %c0_13, %c0_14, %c0_15] : memref<1x4x1x16xf32, #tpu.memory_space<vmem>>, vector<1x4x1x16xf32>
    %23 = vector.broadcast %22 : vector<1x4x1x16xf32> to vector<1x4x16x16xf32>
    %24 = arith.mulf %21, %23 : vector<1x4x16x16xf32>
    %c0_16 = arith.constant 0 : index
    %c0_17 = arith.constant 0 : index
    %c0_18 = arith.constant 0 : index
    %c0_19 = arith.constant 0 : index
    %25 = vector.load %arg4[%c0_16, %c0_17, %c0_18, %c0_19] : memref<1x4x1x16xf32, #tpu.memory_space<vmem>>, vector<1x4x1x16xf32>
    %26 = vector.broadcast %25 : vector<1x4x1x16xf32> to vector<1x4x16x16xf32>
    %27 = arith.addf %24, %26 : vector<1x4x16x16xf32>
    %c0_20 = arith.constant 0 : index
    %c0_21 = arith.constant 0 : index
    %c0_22 = arith.constant 0 : index
    %c0_23 = arith.constant 0 : index
    %28 = vector.load %arg5[%c0_20, %c0_21, %c0_22, %c0_23] : memref<1x4x16x16xf32, #tpu.memory_space<vmem>>, vector<1x4x16x16xf32>
    tpu.vector_store %arg5[%c0_20, %c0_21, %c0_22, %c0_23], %27 {strides = array<i32>} : memref<1x4x16x16xf32, #tpu.memory_space<vmem>>, vector<1x4x16x16xf32>,
    return
  }
  func.func @transform_0(%arg0: i32, %arg1: i32) -> (i32, i32, i32, i32) {
    %c0_i32 = arith.constant 0 : i32
    %c0_i32_0 = arith.constant 0 : i32
    %c0_i32_1 = arith.constant 0 : i32
    return %arg0, %c0_i32, %arg1, %c0_i32_0 : i32, i32, i32, i32
  }
  func.func @transform_1(%arg0: i32, %arg1: i32) -> (i32, i32, i32, i32) {
    %c0_i32 = arith.constant 0 : i32
    %c0_i32_0 = arith.constant 0 : i32
    %c0_i32_1 = arith.constant 0 : i32
    %c0_i32_2 = arith.constant 0 : i32
    %c0_i32_3 = arith.constant 0 : i32
    return %c0_i32, %c0_i32_0, %c0_i32_1, %c0_i32_2 : i32, i32, i32, i32
  }
  func.func @transform_2(%arg0: i32, %arg1: i32) -> (i32, i32, i32, i32) {
    %c0_i32 = arith.constant 0 : i32
    %c0_i32_0 = arith.constant 0 : i32
    %c0_i32_1 = arith.constant 0 : i32
    %c0_i32_2 = arith.constant 0 : i32
    %c0_i32_3 = arith.constant 0 : i32
    return %c0_i32, %c0_i32_0, %c0_i32_1, %c0_i32_2 : i32, i32, i32, i32
  }
  func.func @transform_3(%arg0: i32, %arg1: i32) -> (i32, i32, i32, i32) {
    %c0_i32 = arith.constant 0 : i32
    %c0_i32_0 = arith.constant 0 : i32
    %c0_i32_1 = arith.constant 0 : i32
    return %arg0, %c0_i32, %arg1, %c0_i32_0 : i32, i32, i32, i32
  }
}

</mosaic_0001>

<llo_original>
// kernel: tpu_custom_call.1
$region0: #{tpu_custom_call.1}
  #allocation0 [shape = 'u32[]', space=smem, size = 0x4, offset = 0x4, fixed_abs, tag = 'smem constant byte address 0x4 - core index']
  #allocation1 [shape = 'u32[72,128]{1,0:T(1,128)}', space=vmem, size = 0x9000, scoped, tag = 'internal scratch']
  %s0 = inlined_call_operand.hbm [shape: f32[2,4,16,16], index: 0, kind: input, shape index: {}]
  %s1 = inlined_call_operand.hbm [shape: f32[1,4,1,16], index: 1, kind: input, shape index: {}]
  %s2 = inlined_call_operand.hbm [shape: f32[1,4,1,16], index: 2, kind: input, shape index: {}]
  %s3 = inlined_call_operand.hbm [shape: f32[2,4,16,16], index: 3, kind: output, shape index: {}]
  %s4 = sld [smem:[#allocation0]]
  $region57: #{tpu_custom_call.1} parent=0
    _
  %s6 = ssub.s32 1, %s4
  %s7 = scalar_select 0, %s6, %s4
  $region1: #{tpu_custom_call.1} parent=0
    #allocation2 [shape = 'u8[65536]{0}', space=vmem, size = 0x10000, scoped, tag = 'input window, operand 0']
    #allocation3 [shape = 's32[2]{0}', space=sflag, size = 0x8, scoped, tag = 'scoped memory for tpu_custom_call.1']
    #allocation4 [shape = 's32[2]{0}', space=sflag, size = 0x8, scoped, tag = 'scoped memory for tpu_custom_call.1']
    #allocation5 [shape = 'u8[2048]{0}', space=vmem, size = 0x800, scoped, tag = 'input window, operand 1, single buffered']
    #allocation6 [shape = 's32[1]{0}', space=sflag, size = 0x4, scoped, tag = 'scoped memory for tpu_custom_call.1']
    #allocation7 [shape = 'u8[2048]{0}', space=vmem, size = 0x800, scoped, tag = 'input window, operand 2, single buffered']
    #allocation8 [shape = 'u8[65536]{0}', space=vmem, size = 0x10000, scoped, tag = 'output window, operand 0']
    %8 = vsyncpa [#allocation3], 0
    %s9 = scalar_lea.sflag [#allocation3], 1
    %10 = vsyncpa %s9, 0
    %11 = vsyncpa [#allocation6], 0
    %12 = vsyncpa [#allocation4], 0
    %s13 = scalar_lea.sflag [#allocation4], 1
    %14 = vsyncpa %s13, 0
    loop: start=0, step=1, limit=4
    $region2: #{tpu_custom_call.1} parent=1 // loop_pre_header
      _
    $region3: #{tpu_custom_call.1} parent=1 // loop_header
      %s16 = sphi 0, %s20
      %p17 = scmp.ge.s32.totalorder %s16, 4
      %s23 = sphi 0, %s35
      %s24 = sphi 0, %s31
      %s25 = sphi 0, %s23
      %s26 = sphi 0, %s24
      %s27 = sphi 0, %s25
      %s28 = sphi 0, %s26
      %s40 = sphi 0, %s42
      %s43 = sphi 0, %s40
      %s44 = sphi 0, %s43
      %s60 = sphi 0, %s44
      %s64 = sphi 0, %s64
      %s66 = sphi 0, %s64
      %s67 = sphi 0, %s66
      %s81 = sphi 0, %s67
      %s85 = sphi 0, %s85
      %s87 = sphi 0, %s85
      %s88 = sphi 0, %s87
      %s102 = sphi 0, %s88
      %s110 = sphi 0, %s112
      %s113 = sphi 0, %s110
      %s114 = sphi 0, %s113
      %s130 = sphi 0, %s114
    $region4: #{tpu_custom_call.1} parent=1 // loop_header_branch
      %19 = sbr.rel (%p17) target = $region8
    $region5: #{tpu_custom_call.1} parent=1 // loop_body
      %s21 = ssub.s32 %s16, 1
      %s22 = ssub.s32 %s16, 2
      %s29 = sadd.s32 1, %s24
      %p30 = scmp.ge.s32.totalorder %s29, 1
      %s31 = scalar_select %p30, 0, %s29
      %s32 = sadd.s32 1, %s23
      %s33 = scalar_select %p30, %s32, %s23
      %p34 = scmp.ge.s32.totalorder %s33, 2
      %s35 = scalar_select %p34, 0, %s33
      %s36 = ssub.s32 %s23, %s35
      %s37 = ssub.s32 %s24, %s31
      %s38 = sor.u32 %s36, %s37
      %p39 = scmp.eq.s32.totalorder %s38, 0
      %s41 = sadd.s32 %s40, 1
      %s42 = scalar_select %p39, %s40, %s41
      %p45 = pneg %p39
      %p46 = scmp.eq.s32.totalorder %s16, 1
      %p47 = por %p45, %p46
      %p48 = scmp.ne.s32.totalorder %s40, %s43
      %p49 = scmp.eq.s32.totalorder %s16, 0
      %p50 = por %p48, %p49
      %p51 = scmp.ne.s32.totalorder %s40, %s43
      %p52 = scmp.eq.s32.totalorder %s21, 1
      %p53 = por %p51, %p52
      %p54 = scmp.ne.s32.totalorder %s43, %s44
      %p55 = scmp.eq.s32.totalorder %s21, 0
      %p56 = por %p54, %p55
      %p57 = scmp.ne.s32.totalorder %s43, %s44
      %p58 = scmp.eq.s32.totalorder %s22, 1
      %p59 = por %p57, %p58
      %p61 = scmp.ne.s32.totalorder %s44, %s60
      %p62 = scmp.eq.s32.totalorder %s22, 0
      %p63 = por %p61, %p62
      %s65 = sadd.s32 %s64, 1
      %p68 = scmp.eq.s32.totalorder %s16, 1
      %p69 = scmp.ne.s32.totalorder %s64, %s66
      %p70 = scmp.eq.s32.totalorder %s16, 0
      %p71 = por %p69, %p70
      %p72 = scmp.ne.s32.totalorder %s64, %s66
      %p73 = scmp.eq.s32.totalorder %s21, 1
      %p74 = por %p72, %p73
      %p75 = scmp.ne.s32.totalorder %s66, %s67
      %p76 = scmp.eq.s32.totalorder %s21, 0
      %p77 = por %p75, %p76
      %p78 = scmp.ne.s32.totalorder %s66, %s67
      %p79 = scmp.eq.s32.totalorder %s22, 1
      %p80 = por %p78, %p79
      %p82 = scmp.ne.s32.totalorder %s67, %s81
      %p83 = scmp.eq.s32.totalorder %s22, 0
      %p84 = por %p82, %p83
      %s86 = sadd.s32 %s85, 1
      %p89 = scmp.eq.s32.totalorder %s16, 1
      %p90 = scmp.ne.s32.totalorder %s85, %s87
      %p91 = scmp.eq.s32.totalorder %s16, 0
      %p92 = por %p90, %p91
      %p93 = scmp.ne.s32.totalorder %s85, %s87
      %p94 = scmp.eq.s32.totalorder %s21, 1
      %p95 = por %p93, %p94
      %p96 = scmp.ne.s32.totalorder %s87, %s88
      %p97 = scmp.eq.s32.totalorder %s21, 0
      %p98 = por %p96, %p97
      %p99 = scmp.ne.s32.totalorder %s87, %s88
      %p100 = scmp.eq.s32.totalorder %s22, 1
      %p101 = por %p99, %p100
      %p103 = scmp.ne.s32.totalorder %s88, %s102
      %p104 = scmp.eq.s32.totalorder %s22, 0
      %p105 = por %p103, %p104
      %s106 = ssub.s32 %s23, %s35
      %s107 = ssub.s32 %s24, %s31
      %s108 = sor.u32 %s106, %s107
      %p109 = scmp.eq.s32.totalorder %s108, 0
      %s111 = sadd.s32 %s110, 1
      %s112 = scalar_select %p109, %s110, %s111
      %p115 = pneg %p109
      %p116 = scmp.eq.s32.totalorder %s16, 1
      %p117 = por %p115, %p116
      %p118 = scmp.ne.s32.totalorder %s110, %s113
      %p119 = scmp.eq.s32.totalorder %s16, 0
      %p120 = por %p118, %p119
      %p121 = scmp.ne.s32.totalorder %s110, %s113
      %p122 = scmp.eq.s32.totalorder %s21, 1
      %p123 = por %p121, %p122
      %p124 = scmp.ne.s32.totalorder %s113, %s114
      %p125 = scmp.eq.s32.totalorder %s21, 0
      %p126 = por %p124, %p125
      %p127 = scmp.ne.s32.totalorder %s113, %s114
      %p128 = scmp.eq.s32.totalorder %s22, 1
      %p129 = por %p127, %p128
      %p131 = scmp.ne.s32.totalorder %s114, %s130
      %p132 = scmp.eq.s32.totalorder %s22, 0
      %p133 = por %p131, %p132
      %p134 = scmp.le.s32.totalorder 1, %s16
      %p135 = scmp.lt.s32.totalorder %s16, 3
      %p136 = pnand %p134, %p135
      %p137 = pneg %p136
      // Predicated region
      $region9: #{tpu_custom_call.1} parent=5 // pred_check
        _
      $region10: #{tpu_custom_call.1} parent=5 // pred_check_branch
        %139 = sbr.rel (%p136) target = $region12
      $region11: #{tpu_custom_call.1} parent=5 // pred_region
        %s140 = ssub.s32 %s16, 1
        // Predicated region
        $region13: #{tpu_custom_call.1} parent=11 // pred_check
          %p141 = pneg %p77
        $region14: #{tpu_custom_call.1} parent=11 // pred_check_branch
          %143 = sbr.rel (%p141) target = $region16
        $region15: #{tpu_custom_call.1} parent=11 // pred_region
          %145 = vsyncadd [#allocation6], 0
          %s146 = sshll.u32 %s1, 4
          %s147 = int_to_ptr.hbm [resolvable:$true] %s146
          %s148 = sshll.u32 [#allocation5], 4
          %s149 = int_to_ptr.vmem [resolvable:$true] %s148
          %154 = dma.hbm_to_vmem [thread:$0]  %s147, 64, %s149, [#allocation6], 16, 16, 1
        $region16: #{tpu_custom_call.1} parent=11 // pred_fallthru
          _
        // Predicated region
        $region17: #{tpu_custom_call.1} parent=11 // pred_check
          %p155 = pneg %p98
        $region18: #{tpu_custom_call.1} parent=11 // pred_check_branch
          %157 = sbr.rel (%p155) target = $region20
        $region19: #{tpu_custom_call.1} parent=11 // pred_region
          %159 = vsyncadd [#allocation6], 0
          %s160 = sshll.u32 %s2, 4
          %s161 = int_to_ptr.hbm [resolvable:$true] %s160
          %s162 = sshll.u32 [#allocation7], 4
          %s163 = int_to_ptr.vmem [resolvable:$true] %s162
          %168 = dma.hbm_to_vmem [thread:$0]  %s161, 64, %s163, [#allocation6], 16, 16, 1
        $region20: #{tpu_custom_call.1} parent=11 // pred_fallthru
          _
      $region12: #{tpu_custom_call.1} parent=5 // pred_fallthru
        _
      %p169 = scmp.lt.s32.totalorder %s16, 2
      // Predicated region
      $region21: #{tpu_custom_call.1} parent=5 // pred_check
        %p170 = pneg %p169
      $region22: #{tpu_custom_call.1} parent=5 // pred_check_branch
        %172 = sbr.rel (%p170) target = $region24
      $region23: #{tpu_custom_call.1} parent=5 // pred_region
        // Predicated region
        $region25: #{tpu_custom_call.1} parent=23 // pred_check
          %p173 = pneg %p50
        $region26: #{tpu_custom_call.1} parent=23 // pred_check_branch
          %175 = sbr.rel (%p173) target = $region28
        $region27: #{tpu_custom_call.1} parent=23 // pred_region
          %s176 = sand.u32 %s40, 1
          %s177 = scalar_lea.sflag [#allocation3], %s176
          %s178 = sand.u32 %s40, 1
          %s179 = smul.addr %s178, 64
          %s180 = scalar_lea.vmem [#allocation2], %s179
          %s181 = smul.u32 2, %s24
          %183 = vsyncadd %s177, 0
          %s184 = smul.addr %s23, 8
          %s185 = sadd.s32 %s181, %s184
          %s186 = smul.addr %s185, 8
          %s187 = scalar_lea.hbm %s0, %s186
          %s188 = sshll.u32 %s187, 4
          %s189 = int_to_ptr.hbm [resolvable:$true] %s188
          %s190 = sshll.u32 %s180, 4
          %s191 = int_to_ptr.vmem [resolvable:$true] %s190
          %196 = dma.hbm_to_vmem [thread:$0]  %s189, 1024, %s191, %s177, 128, 128, 8
        $region28: #{tpu_custom_call.1} parent=23 // pred_fallthru
          _
      $region24: #{tpu_custom_call.1} parent=5 // pred_fallthru
        _
      %p197 = scmp.le.s32.totalorder 1, %s16
      %p198 = scmp.lt.s32.totalorder %s16, 3
      %p199 = pnand %p197, %p198
      %p200 = pneg %p199
      // Predicated region
      $region29: #{tpu_custom_call.1} parent=5 // pred_check
        _
      $region30: #{tpu_custom_call.1} parent=5 // pred_check_branch
        %202 = sbr.rel (%p199) target = $region32
      $region31: #{tpu_custom_call.1} parent=5 // pred_region
        %s203 = ssub.s32 %s16, 1
        %s204 = sand.u32 %s43, 1
        %s205 = scalar_lea.sflag [#allocation3], %s204
        %s206 = sand.u32 %s43, 1
        %s207 = smul.addr %s206, 64
        %s208 = scalar_lea.vmem [#allocation2], %s207
        // Predicated region
        $region33: #{tpu_custom_call.1} parent=31 // pred_check
          %p209 = pneg %p56
        $region34: #{tpu_custom_call.1} parent=31 // pred_check_branch
          %211 = sbr.rel (%p209) target = $region36
        $region35: #{tpu_custom_call.1} parent=31 // pred_region
          %213 = dma.done %s205, 1024
        $region36: #{tpu_custom_call.1} parent=31 // pred_fallthru
          _
        // Predicated region
        $region37: #{tpu_custom_call.1} parent=31 // pred_check
          %p214 = pneg %p77
        $region38: #{tpu_custom_call.1} parent=31 // pred_check_branch
          %216 = sbr.rel (%p214) target = $region40
        $region39: #{tpu_custom_call.1} parent=31 // pred_region
          %218 = dma.done [#allocation6], 64
        $region40: #{tpu_custom_call.1} parent=31 // pred_fallthru
          _
        // Predicated region
        $region41: #{tpu_custom_call.1} parent=31 // pred_check
          %p219 = pneg %p98
        $region42: #{tpu_custom_call.1} parent=31 // pred_check_branch
          %221 = sbr.rel (%p219) target = $region44
        $region43: #{tpu_custom_call.1} parent=31 // pred_region
          %223 = dma.done [#allocation6], 64
        $region44: #{tpu_custom_call.1} parent=31 // pred_fallthru
          _
        %s224 = sand.u32 %s43, 1
        %s225 = scalar_lea.sflag [#allocation3], %s224
        %s226 = sand.u32 %s43, 1
        %s227 = smul.addr %s226, 64
        %s228 = scalar_lea.vmem [#allocation2], %s227
        %p229 = pneg %p56
        %p230 = pneg %p53
        %p231 = pneg %p77
        %p232 = pneg %p74
        %p233 = pneg %p98
        %p234 = pneg %p95
        %p235 = pneg %p126
        %p236 = pneg %p123
        %s237 = sand.u32 %s113, 1
        %s238 = scalar_lea.sflag [#allocation4], %s237
        %s239 = sand.u32 %s113, 1
        %s240 = smul.addr %s239, 64
        %s241 = scalar_lea.vmem [#allocation8], %s240
        %s242 = smul.u32 2, %s26
        %s243 = smul.u32 2, %s26
        %v244 = vld [vmem:[%s208] sm:$0xff]
        %v245 = vld [vmem:[%s208 + $0x8] sm:$0xff]
        %v246 = vld [vmem:[%s208 + $0x10] sm:$0xff]
        %v247 = vld [vmem:[%s208 + $0x18] sm:$0xff]
        %v248 = vld [vmem:[%s208 + $0x20] sm:$0xff]
        %v249 = vld [vmem:[%s208 + $0x28] sm:$0xff]
        %v250 = vld [vmem:[%s208 + $0x30] sm:$0xff]
        %v251 = vld [vmem:[%s208 + $0x38] sm:$0xff]
        %vm252 = vcmask 130048
        %v253 = vsel %vm252, %v244, 0.0
        %v254 = vsel %vm252, %v246, 0.0
        %v255 = vadd.f32 %v253, %v254
        %v256 = vsel %vm252, %v248, 0.0
        %v257 = vadd.f32 %v255, %v256
        %v258 = vsel %vm252, %v250, 0.0
        %v259 = vadd.f32 %v257, %v258
        %260 = vadd.xlane.f32.xlu0 %v259
        %v261 = vpop.xlane.xlu0 %260
        %v262 = vsel %vm252, %v245, 0.0
        %v263 = vsel %vm252, %v247, 0.0
        %v264 = vadd.f32 %v262, %v263
        %v265 = vsel %vm252, %v249, 0.0
        %v266 = vadd.f32 %v264, %v265
        %v267 = vsel %vm252, %v251, 0.0
        %v268 = vadd.f32 %v266, %v267
        %269 = vadd.xlane.f32.xlu0 %v268
        %v270 = vpop.xlane.xlu0 %269
        %v271 = vrcp.pop 64.0
        %v272 = vmul.f32 64.0, %v271
        %v273 = vsub.f32 1.0, %v272
        %v274 = vmul.f32 %v271, %v273
        %v275 = vadd.f32 %v271, %v274
        %vm276 = vweird.f32 %v271
        %v277 = vsel %vm276, %v271, %v275
        %v278 = vmul.f32 %v261, %v277
        %v279 = vmul.f32 %v270, %v277
        %v280 = vmul.f32 %v244, %v244
        %v281 = vmul.f32 %v245, %v245
        %v282 = vmul.f32 %v246, %v246
        %v283 = vmul.f32 %v247, %v247
        %v284 = vmul.f32 %v248, %v248
        %v285 = vmul.f32 %v249, %v249
        %v286 = vmul.f32 %v250, %v250
        %v287 = vmul.f32 %v251, %v251
        %v288 = vsel %vm252, %v280, 0.0
        %v289 = vsel %vm252, %v282, 0.0
        %v290 = vadd.f32 %v288, %v289
        %v291 = vsel %vm252, %v284, 0.0
        %v292 = vadd.f32 %v290, %v291
        %v293 = vsel %vm252, %v286, 0.0
        %v294 = vadd.f32 %v292, %v293
        %295 = vadd.xlane.f32.xlu0 %v294
        %v296 = vpop.xlane.xlu0 %295
        %v297 = vsel %vm252, %v281, 0.0
        %v298 = vsel %vm252, %v283, 0.0
        %v299 = vadd.f32 %v297, %v298
        %v300 = vsel %vm252, %v285, 0.0
        %v301 = vadd.f32 %v299, %v300
        %v302 = vsel %vm252, %v287, 0.0
        %v303 = vadd.f32 %v301, %v302
        %304 = vadd.xlane.f32.xlu0 %v303
        %v305 = vpop.xlane.xlu0 %304
        %v306 = vmul.f32 %v296, %v277
        %v307 = vmul.f32 %v305, %v277
        %v308 = vmul.f32 %v278, %v278
        %v309 = vmul.f32 %v279, %v279
        %v310 = vsub.f32 %v306, %v308
        %v311 = vsub.f32 %v307, %v309
        %v312 = vmax.f32 %v310, 0.0
        %v313 = vmax.f32 %v311, 0.0
        %v314 = vadd.f32 %v312, 1e-05
        %v315 = vadd.f32 %v313, 1e-05
        %v316 = vrsqrt.pop %v314
        %v317 = vmul.f32 %v316, %v314
        %v318 = vmul.f32 %v317, %v316
        %v319 = vmul.f32 0.5, %v318
        %v320 = vsub.f32 1.5, %v319
        %v321 = vmul.f32 %v316, %v320
        %vm322 = vweird.f32 %v314
        %vm323 = vweird.f32 %v316
        %vm324 = vmor %vm322, %vm323
        %v325 = vsel %vm324, %v316, %v321
        %v326 = vrsqrt.pop %v315
        %v327 = vmul.f32 %v326, %v315
        %v328 = vmul.f32 %v327, %v326
        %v329 = vmul.f32 0.5, %v328
        %v330 = vsub.f32 1.5, %v329
        %v331 = vmul.f32 %v326, %v330
        %vm332 = vweird.f32 %v315
        %vm333 = vweird.f32 %v326
        %vm334 = vmor %vm332, %vm333
        %v335 = vsel %vm334, %v326, %v331
        %v336 = vsub.f32 %v244, %v278
        %v337 = vsub.f32 %v245, %v279
        %v338 = vsub.f32 %v246, %v278
        %v339 = vsub.f32 %v247, %v279
        %v340 = vsub.f32 %v248, %v278
        %v341 = vsub.f32 %v249, %v279
        %v342 = vsub.f32 %v250, %v278
        %v343 = vsub.f32 %v251, %v279
        %v344 = vmul.f32 %v336, %v325
        %v345 = vmul.f32 %v337, %v335
        %v346 = vmul.f32 %v338, %v325
        %v347 = vmul.f32 %v339, %v335
        %v348 = vmul.f32 %v340, %v325
        %v349 = vmul.f32 %v341, %v335
        %v350 = vmul.f32 %v342, %v325
        %v351 = vmul.f32 %v343, %v335
        %v352 = vld [vmem:[#allocation5] sm:$0x1]
        %v353 = vld [vmem:[#allocation5 + $0x1] sm:$0x1]
        %v354 = vld [vmem:[#allocation5 + $0x2] sm:$0x1]
        %v355 = vld [vmem:[#allocation5 + $0x3] sm:$0x1]
        %v360 = vperm.slane %v352, 0
        %v361 = vperm.slane %v353, 0
        %v362 = vperm.slane %v354, 0
        %v363 = vperm.slane %v355, 0
        %v368 = vmul.f32 %v344, %v360
        %v369 = vmul.f32 %v345, %v360
        %v370 = vmul.f32 %v346, %v361
        %v371 = vmul.f32 %v347, %v361
        %v372 = vmul.f32 %v348, %v362
        %v373 = vmul.f32 %v349, %v362
        %v374 = vmul.f32 %v350, %v363
        %v375 = vmul.f32 %v351, %v363
        %v376 = vld [vmem:[#allocation7] sm:$0x1]
        %v377 = vld [vmem:[#allocation7 + $0x1] sm:$0x1]
        %v378 = vld [vmem:[#allocation7 + $0x2] sm:$0x1]
        %v379 = vld [vmem:[#allocation7 + $0x3] sm:$0x1]
        %v384 = vperm.slane %v376, 0
        %v385 = vperm.slane %v377, 0
        %v386 = vperm.slane %v378, 0
        %v387 = vperm.slane %v379, 0
        %v392 = vadd.f32 %v368, %v384
        %v393 = vadd.f32 %v369, %v384
        %v394 = vadd.f32 %v370, %v385
        %v395 = vadd.f32 %v371, %v385
        %v396 = vadd.f32 %v372, %v386
        %v397 = vadd.f32 %v373, %v386
        %v398 = vadd.f32 %v374, %v387
        %v399 = vadd.f32 %v375, %v387
        %400 = vst.msk [vmem:[%s241] sm:$0xff] %vm252, %v392
        %401 = vst.msk [vmem:[%s241 + $0x8] sm:$0xff] %vm252, %v393
        %402 = vst.msk [vmem:[%s241 + $0x10] sm:$0xff] %vm252, %v394
        %403 = vst.msk [vmem:[%s241 + $0x18] sm:$0xff] %vm252, %v395
        %404 = vst.msk [vmem:[%s241 + $0x20] sm:$0xff] %vm252, %v396
        %405 = vst.msk [vmem:[%s241 + $0x28] sm:$0xff] %vm252, %v397
        %406 = vst.msk [vmem:[%s241 + $0x30] sm:$0xff] %vm252, %v398
        %407 = vst.msk [vmem:[%s241 + $0x38] sm:$0xff] %vm252, %v399
        %s408 = sand.u32 %s113, 1
        %s409 = scalar_lea.sflag [#allocation4], %s408
        %s410 = sand.u32 %s113, 1
        %s411 = smul.addr %s410, 64
        %s412 = scalar_lea.vmem [#allocation8], %s411
        // Predicated region
        $region45: #{tpu_custom_call.1} parent=31 // pred_check
          %p413 = pneg %p123
        $region46: #{tpu_custom_call.1} parent=31 // pred_check_branch
          %415 = sbr.rel (%p413) target = $region48
        $region47: #{tpu_custom_call.1} parent=31 // pred_region
          %s416 = smul.u32 2, %s26
          %418 = vsyncadd %s409, 0
          %s419 = smul.addr %s25, 8
          %s420 = sadd.s32 %s416, %s419
          %s421 = smul.addr %s420, 8
          %s422 = scalar_lea.hbm %s3, %s421
          %s423 = sshll.u32 %s412, 4
          %s424 = int_to_ptr.vmem [resolvable:$true] %s423
          %s425 = sshll.u32 %s422, 4
          %s426 = int_to_ptr.hbm [resolvable:$true] %s425
          %431 = dma.vmem_to_hbm [thread:$0]  %s424, 1024, %s426, %s409, 128, 128, 8
        $region48: #{tpu_custom_call.1} parent=31 // pred_fallthru
          _
      $region32: #{tpu_custom_call.1} parent=5 // pred_fallthru
        _
      %p432 = scmp.le.s32.totalorder 2, %s16
      // Predicated region
      $region49: #{tpu_custom_call.1} parent=5 // pred_check
        %p433 = pneg %p432
      $region50: #{tpu_custom_call.1} parent=5 // pred_check_branch
        %435 = sbr.rel (%p433) target = $region52
      $region51: #{tpu_custom_call.1} parent=5 // pred_region
        %s436 = ssub.s32 %s16, 2
        // Predicated region
        $region53: #{tpu_custom_call.1} parent=51 // pred_check
          %p437 = pneg %p129
        $region54: #{tpu_custom_call.1} parent=51 // pred_check_branch
          %439 = sbr.rel (%p437) target = $region56
        $region55: #{tpu_custom_call.1} parent=51 // pred_region
          %s440 = sand.u32 %s114, 1
          %s441 = scalar_lea.sflag [#allocation4], %s440
          %s442 = sand.u32 %s114, 1
          %s443 = smul.addr %s442, 64
          %s444 = scalar_lea.vmem [#allocation8], %s443
          %446 = dma.done %s441, 1024
        $region56: #{tpu_custom_call.1} parent=51 // pred_fallthru
          _
      $region52: #{tpu_custom_call.1} parent=5 // pred_fallthru
        _
    $region6: #{tpu_custom_call.1} parent=1 // loop_footer
      %s20 = sadd.s32 1, %s16
    $region7: #{tpu_custom_call.1} parent=1 // loop_footer_branch
      %15 = sbr.rel target = $region3
    $region8: #{tpu_custom_call.1} parent=1 // loop_exit
      _
    %447 = vsyncpa [#allocation3], 1
    %s448 = scalar_lea.sflag [#allocation3], 1
    %449 = vsyncpa %s448, 1
    %450 = vsyncpa [#allocation6], 1
    %451 = vsyncpa [#allocation4], 1
    %s452 = scalar_lea.sflag [#allocation4], 1
    %453 = vsyncpa %s452, 1

</llo_original>
